<compile_context>
chip_gen: v7x
topology: tpu7x:2x2x1
jax: 0.10.0
libtpu: 0.0.40
codegen_flags: <defaults>
</compile_context>

<pallas_src>
import functools

import jax
import jax.numpy as jnp
from jax.experimental import pallas as pl
from jax.experimental.pallas import tpu as pltpu

LANES = 128
MAX_ROW_TILE = 1024  # 1024 x 128 f32 = 512 KiB per input block


def _rmse_kernel(p_ref, l_ref, o_ref, acc_ref, *, total_rows, row_tile,
                 blocks_per_shard, needs_mask):
    j = pl.program_id(1)

    @pl.when(j == 0)
    def _():
        acc_ref[...] = jnp.zeros_like(acc_ref)

    d = p_ref[...].astype(jnp.float32) - l_ref[...].astype(jnp.float32)
    if needs_mask:
        c = pl.program_id(0)
        block_idx = c * blocks_per_shard + j  # logical (unclamped) block index
        row_ids = (jax.lax.broadcasted_iota(jnp.int32, d.shape, 0)
                   + block_idx * row_tile)
        d = jnp.where(row_ids < total_rows, d, 0.0)
    acc_ref[...] += d * d

    @pl.when(j == pl.num_programs(1) - 1)
    def _():
        psum = jnp.sum(acc_ref[...])
        o_ref[...] = jnp.broadcast_to(psum, o_ref.shape)


def rmse_loss(predict, label, eps=1e-08):
    assert predict.shape == label.shape
    n_elements = predict.size

    # Flatten to a (rows, 128) lane-major slab in the ORIGINAL dtype.
    flat_p = jnp.ravel(predict)
    flat_l = jnp.ravel(label)
    rows = pl.cdiv(n_elements, LANES)
    padded_len = rows * LANES
    if padded_len != n_elements:  # tiny lane-tail pad only when ragged
        pad = padded_len - n_elements
        flat_p = jnp.pad(flat_p, (0, pad))
        flat_l = jnp.pad(flat_l, (0, pad))
    p2 = flat_p.reshape(rows, LANES)
    l2 = flat_l.reshape(rows, LANES)

    # Tiling: single full-slab block for small inputs, 1024-row tiles otherwise.
    row_tile = rows if rows <= MAX_ROW_TILE else MAX_ROW_TILE
    num_blocks = pl.cdiv(rows, row_tile)
    # Shard the reduction across 2 TensorCores (v7x megacore) when big enough.
    num_shards = 2 if num_blocks >= 4 else 1
    blocks_per_shard = pl.cdiv(num_blocks, num_shards)
    needs_mask = (num_shards * blocks_per_shard * row_tile) != rows

    if num_shards * blocks_per_shard == num_blocks:
        in_idx = lambda c, j: (c * blocks_per_shard + j, 0)
    else:
        # Clamp so the DMA never targets a block past the array; the clamped
        # duplicate block is fully masked out in-kernel.
        last_block = num_blocks - 1
        in_idx = lambda c, j: (jnp.minimum(c * blocks_per_shard + j, last_block), 0)

    kernel = functools.partial(
        _rmse_kernel,
        total_rows=rows,
        row_tile=row_tile,
        blocks_per_shard=blocks_per_shard,
        needs_mask=needs_mask,
    )

    out = pl.pallas_call(
        kernel,
        out_shape=jax.ShapeDtypeStruct((num_shards, 8, LANES), jnp.float32),
        grid_spec=pltpu.PrefetchScalarGridSpec(
            num_scalar_prefetch=0,
            grid=(num_shards, blocks_per_shard),
            in_specs=[
                pl.BlockSpec((row_tile, LANES), in_idx),
                pl.BlockSpec((row_tile, LANES), in_idx),
            ],
            out_specs=pl.BlockSpec((1, 8, LANES), lambda c, j: (c, 0, 0)),
            scratch_shapes=[pltpu.VMEM((row_tile, LANES), jnp.float32)],
        ),
        compiler_params=pltpu.CompilerParams(
            dimension_semantics=("parallel", "arbitrary"),
        ),
    )(p2, l2)

    partial_sums = out[:, 0, 0]
    mse = jnp.sum(partial_sums) / jnp.float32(n_elements)
    return jnp.sqrt(mse + jnp.float32(eps))


if __name__ == "__main__":
    key = jax.random.PRNGKey(0)
    kp, kl = jax.random.split(key)
    # Shapes consistent with a CNN regression head's predictions/labels.
    predict = jax.random.normal(kp, (2, 4, 16, 16), dtype=jnp.float32)
    label = jax.random.normal(kl, (2, 4, 16, 16), dtype=jnp.float32)

    loss = rmse_loss(predict, label, eps=1e-08)
    jax.block_until_ready(loss)
    ref = jnp.sqrt(jnp.mean((predict - label) ** 2) + 1e-08)
    assert jnp.allclose(loss, ref, rtol=1e-5, atol=1e-6), (loss, ref)

    # Also exercise the tiled / 2-shard / masked-tail path (ragged rows + lanes).
    kp2, kl2 = jax.random.split(jax.random.PRNGKey(1))
    p_big = jax.random.normal(kp2, (701, 749), dtype=jnp.float32)
    l_big = jax.random.normal(kl2, (701, 749), dtype=jnp.float32)
    loss_big = rmse_loss(p_big, l_big, eps=1e-08)
    jax.block_until_ready(loss_big)
    ref_big = jnp.sqrt(jnp.mean((p_big - l_big) ** 2) + 1e-08)
    assert jnp.allclose(loss_big, ref_big, rtol=1e-5, atol=1e-6), (loss_big, ref_big)

    print("KERNEL_OK")
</pallas_src>

<mosaic_0001>
module attributes {stable_mosaic.version = 11 : i64} {
  func.func @_rmse_kernel(%arg0: i32, %arg1: i32, %arg2: memref<16x128xf32, #tpu.memory_space<vmem>>, %arg3: memref<16x128xf32, #tpu.memory_space<vmem>>, %arg4: memref<1x8x128xf32, #tpu.memory_space<vmem>>, %arg5: memref<16x128xf32, #tpu.memory_space<vmem>>) attributes {dimension_semantics = [#tpu.dimension_semantics<parallel>, #tpu.dimension_semantics<arbitrary>], iteration_bounds = array<i64: 1, 1>, scalar_prefetch = 0 : i64, scratch_operands = 1 : i64, tpu.core_type = #tpu.core_type<tc>, window_params = [{transform_indices = @transform_0, window_bounds = array<i64: 16, 128>}, {transform_indices = @transform_1, window_bounds = array<i64: 16, 128>}, {transform_indices = @transform_2, window_bounds = array<i64: 1, 8, 128>}]} {
    %c0_i32 = arith.constant 0 : i32
    %0 = arith.cmpi eq, %arg1, %c0_i32 : i32
    %1 = arith.extui %0 : i1 to i32
    %c0_i32_0 = arith.constant 0 : i32
    %2 = arith.cmpi ne, %1, %c0_i32_0 : i32
    scf.if %2 {
      %cst = arith.constant 0.000000e+00 : f32
      %13 = vector.broadcast %cst : f32 to vector<16x128xf32>
      %c0_10 = arith.constant 0 : index
      %c0_11 = arith.constant 0 : index
      %14 = vector.load %arg5[%c0_10, %c0_11] : memref<16x128xf32, #tpu.memory_space<vmem>>, vector<16x128xf32>
      tpu.vector_store %arg5[%c0_10, %c0_11], %13 {strides = array<i32>} : memref<16x128xf32, #tpu.memory_space<vmem>>, vector<16x128xf32>,
    } else {
    }
    %c0 = arith.constant 0 : index
    %c0_1 = arith.constant 0 : index
    %3 = vector.load %arg2[%c0, %c0_1] : memref<16x128xf32, #tpu.memory_space<vmem>>, vector<16x128xf32>
    %c0_2 = arith.constant 0 : index
    %c0_3 = arith.constant 0 : index
    %4 = vector.load %arg3[%c0_2, %c0_3] : memref<16x128xf32, #tpu.memory_space<vmem>>, vector<16x128xf32>
    %5 = arith.subf %3, %4 : vector<16x128xf32>
    %c0_4 = arith.constant 0 : index
    %c0_5 = arith.constant 0 : index
    %6 = vector.load %arg5[%c0_4, %c0_5] : memref<16x128xf32, #tpu.memory_space<vmem>>, vector<16x128xf32>
    %7 = arith.mulf %5, %5 : vector<16x128xf32>
    %8 = arith.addf %6, %7 : vector<16x128xf32>
    %c0_6 = arith.constant 0 : index
    %c0_7 = arith.constant 0 : index
    %9 = vector.load %arg5[%c0_6, %c0_7] : memref<16x128xf32, #tpu.memory_space<vmem>>, vector<16x128xf32>
    tpu.vector_store %arg5[%c0_6, %c0_7], %8 {strides = array<i32>} : memref<16x128xf32, #tpu.memory_space<vmem>>, vector<16x128xf32>,
    %c0_i32_8 = arith.constant 0 : i32
    %10 = arith.cmpi eq, %arg1, %c0_i32_8 : i32
    %11 = arith.extui %10 : i1 to i32
    %c0_i32_9 = arith.constant 0 : i32
    %12 = arith.cmpi ne, %11, %c0_i32_9 : i32
    scf.if %12 {
      %c0_10 = arith.constant 0 : index
      %c0_11 = arith.constant 0 : index
      %13 = vector.load %arg5[%c0_10, %c0_11] : memref<16x128xf32, #tpu.memory_space<vmem>>, vector<16x128xf32>
      %14 = vector.shape_cast %13 : vector<16x128xf32> to vector<1x16x128xf32>
      %cst = arith.constant dense<0.000000e+00> : vector<1xf32>
      %15 = vector.multi_reduction <add>, %14, %cst [1, 2] : vector<1x16x128xf32> to vector<1xf32>
      %16 = vector.shape_cast %15 : vector<1xf32> to vector<1x1x1xf32>
      %17 = vector.extract %16[0, 0, 0] : f32 from vector<1x1x1xf32>
      %18 = vector.broadcast %17 : f32 to vector<1x8x128xf32>
      %c0_12 = arith.constant 0 : index
      %c0_13 = arith.constant 0 : index
      %c0_14 = arith.constant 0 : index
      %19 = vector.load %arg4[%c0_12, %c0_13, %c0_14] : memref<1x8x128xf32, #tpu.memory_space<vmem>>, vector<1x8x128xf32>
      tpu.vector_store %arg4[%c0_12, %c0_13, %c0_14], %18 {strides = array<i32>} : memref<1x8x128xf32, #tpu.memory_space<vmem>>, vector<1x8x128xf32>,
    } else {
    }
    return
  }
  func.func @transform_0(%arg0: i32, %arg1: i32) -> (i32, i32) {
    %c1_i32 = arith.constant 1 : i32
    %0 = arith.muli %arg0, %c1_i32 : i32
    %1 = arith.addi %0, %arg1 : i32
    %c0_i32 = arith.constant 0 : i32
    %c0_i32_0 = arith.constant 0 : i32
    return %1, %c0_i32 : i32, i32
  }
  func.func @transform_1(%arg0: i32, %arg1: i32) -> (i32, i32) {
    %c1_i32 = arith.constant 1 : i32
    %0 = arith.muli %arg0, %c1_i32 : i32
    %1 = arith.addi %0, %arg1 : i32
    %c0_i32 = arith.constant 0 : i32
    %c0_i32_0 = arith.constant 0 : i32
    return %1, %c0_i32 : i32, i32
  }
  func.func @transform_2(%arg0: i32, %arg1: i32) -> (i32, i32, i32) {
    %c0_i32 = arith.constant 0 : i32
    %c0_i32_0 = arith.constant 0 : i32
    %c0_i32_1 = arith.constant 0 : i32
    return %arg0, %c0_i32, %c0_i32_0 : i32, i32, i32
  }
}

</mosaic_0001>

<llo_original>
// kernel: tpu_custom_call.1
$region0: #{tpu_custom_call.1}
  #allocation0 [shape = 'u32[]', space=smem, size = 0x4, offset = 0x4, fixed_abs, tag = 'smem constant byte address 0x4 - core index']
  #allocation1 [shape = 'u32[144,128]{1,0:T(1,128)}', space=vmem, size = 0x12000, scoped, tag = 'internal scratch']
  #allocation2 [shape = 'f32[16,128]{1,0:T(8,128)}', space=vmem, size = 0x2000, scoped, tag = 'scratch operand']
  %s0 = inlined_call_operand.hbm [shape: f32[16,128], index: 0, kind: input, shape index: {}]
  %s1 = inlined_call_operand.hbm [shape: f32[16,128], index: 1, kind: input, shape index: {}]
  %s2 = inlined_call_operand.hbm [shape: f32[1,8,128], index: 2, kind: output, shape index: {}]
  %s3 = sld [smem:[#allocation0]]
  $region34: #{tpu_custom_call.1} parent=0
    _
  %s5 = ssub.s32 1, %s3
  %s6 = scalar_select 0, %s5, %s3
  $region1: #{tpu_custom_call.1} parent=0
    #allocation3 [shape = 'u8[8192]{0}', space=vmem, size = 0x2000, scoped, tag = 'input window, operand 0, single buffered']
    #allocation4 [shape = 's32[1]{0}', space=sflag, size = 0x4, scoped, tag = 'scoped memory for tpu_custom_call.1']
    #allocation5 [shape = 's32[1]{0}', space=sflag, size = 0x4, scoped, tag = 'scoped memory for tpu_custom_call.1']
    #allocation6 [shape = 'u8[8192]{0}', space=vmem, size = 0x2000, scoped, tag = 'input window, operand 1, single buffered']
    #allocation7 [shape = 's32[1]{0}', space=sflag, size = 0x4, scoped, tag = 'scoped memory for tpu_custom_call.1']
    #allocation8 [shape = 'u8[4096]{0}', space=vmem, size = 0x1000, scoped, tag = 'output window, operand 0, single buffered']
    %7 = vsyncpa [#allocation4], 0
    %8 = vsyncpa [#allocation7], 0
    %9 = vsyncpa [#allocation5], 0
    // Predicated region
    $region2: #{tpu_custom_call.1} parent=1 // pred_check
      _
    $region3: #{tpu_custom_call.1} parent=1 // pred_check_branch
      %11 = sbr.rel (0) target = $region5
    $region4: #{tpu_custom_call.1} parent=1 // pred_region
      %s12 = sadd.s32 0, 0
      %s13 = smul.u32 2, %s12
      %s15 = ssub.s32 256, 256
      %16 = vsyncadd [#allocation4], %s15
      %s17 = smul.addr %s13, 128
      %s18 = scalar_lea.hbm %s0, %s17
      %s19 = sshll.u32 [#allocation3], 4
      %s20 = int_to_ptr.vmem [resolvable:$true] %s19
      %25 = dma.hbm_to_vmem [thread:$0]  %s18, 256, %s20, [#allocation4], 128, 128, 8
    $region5: #{tpu_custom_call.1} parent=1 // pred_fallthru
      _
    // Predicated region
    $region6: #{tpu_custom_call.1} parent=1 // pred_check
      _
    $region7: #{tpu_custom_call.1} parent=1 // pred_check_branch
      %27 = sbr.rel (0) target = $region9
    $region8: #{tpu_custom_call.1} parent=1 // pred_region
      %s28 = sadd.s32 0, 0
      %s29 = smul.u32 2, %s28
      %s31 = ssub.s32 256, 256
      %32 = vsyncadd [#allocation7], %s31
      %s33 = smul.addr %s29, 128
      %s34 = scalar_lea.hbm %s1, %s33
      %s35 = sshll.u32 [#allocation6], 4
      %s36 = int_to_ptr.vmem [resolvable:$true] %s35
      %41 = dma.hbm_to_vmem [thread:$0]  %s34, 256, %s36, [#allocation7], 128, 128, 8
    $region9: #{tpu_custom_call.1} parent=1 // pred_fallthru
      _
    // Predicated region
    $region10: #{tpu_custom_call.1} parent=1 // pred_check
      _
    $region11: #{tpu_custom_call.1} parent=1 // pred_check_branch
      %43 = sbr.rel (0) target = $region13
    $region12: #{tpu_custom_call.1} parent=1 // pred_region
      %44 = dma.done [#allocation4], 256
    $region13: #{tpu_custom_call.1} parent=1 // pred_fallthru
      _
    // Predicated region
    $region14: #{tpu_custom_call.1} parent=1 // pred_check
      _
    $region15: #{tpu_custom_call.1} parent=1 // pred_check_branch
      %46 = sbr.rel (0) target = $region17
    $region16: #{tpu_custom_call.1} parent=1 // pred_region
      %47 = dma.done [#allocation7], 256
    $region17: #{tpu_custom_call.1} parent=1 // pred_fallthru
      _
    %s48 = sadd.s32 0, 0
    %s49 = smul.u32 2, %s48
    %s50 = sadd.s32 0, 0
    %s51 = smul.u32 2, %s50
    %p52 = scmp.eq.s32.totalorder 0, 0
    // Predicated region
    $region18: #{tpu_custom_call.1} parent=1 // pred_check
      %p53 = pneg %p52
    $region19: #{tpu_custom_call.1} parent=1 // pred_check_branch
      %55 = sbr.rel (%p53) target = $region21
    $region20: #{tpu_custom_call.1} parent=1 // pred_region
      %56 = vst [vmem:[#allocation2] sm:$0xff] 0.0
      %57 = vst [vmem:[#allocation2 + $0x8] sm:$0xff] 0.0
    $region21: #{tpu_custom_call.1} parent=1 // pred_fallthru
      _
    %v58 = vld [vmem:[#allocation3] sm:$0xff]
    %v59 = vld [vmem:[#allocation3 + $0x8] sm:$0xff]
    %v60 = vld [vmem:[#allocation6] sm:$0xff]
    %v61 = vld [vmem:[#allocation6 + $0x8] sm:$0xff]
    %v62 = vsub.f32 %v58, %v60
    %v63 = vsub.f32 %v59, %v61
    %v64 = vld [vmem:[#allocation2] sm:$0xff]
    %v65 = vld [vmem:[#allocation2 + $0x8] sm:$0xff]
    %v66 = vmul.f32 %v62, %v62
    %v67 = vmul.f32 %v63, %v63
    %v68 = vadd.f32 %v64, %v66
    %v69 = vadd.f32 %v65, %v67
    %70 = vst [vmem:[#allocation2] sm:$0xff] %v68
    %71 = vst [vmem:[#allocation2 + $0x8] sm:$0xff] %v69
    // Predicated region
    $region22: #{tpu_custom_call.1} parent=1 // pred_check
      %p72 = pneg %p52
    $region23: #{tpu_custom_call.1} parent=1 // pred_check_branch
      %74 = sbr.rel (%p72) target = $region25
    $region24: #{tpu_custom_call.1} parent=1 // pred_region
      %v75 = vld [vmem:[#allocation2] sm:$0xff]
      %v76 = vld [vmem:[#allocation2 + $0x8] sm:$0xff]
      %v77 = vadd.f32 %v75, %v76
      %78 = vadd.xlane.f32.xlu0 %v77
      %v79 = vpop.xlane.xlu0 %78
      %v80 = vrot.slane %v79, 4
      %v81 = vadd.f32 %v79, %v80
      %v82 = vrot.slane %v81, 2
      %v83 = vadd.f32 %v81, %v82
      %v84 = vrot.slane %v83, 1
      %v85 = vadd.f32 %v83, %v84
      %s86 = vtos %v85
      %v87 = vstv %s86
      %88 = vst [vmem:[#allocation8] sm:$0xff] %v87
    $region25: #{tpu_custom_call.1} parent=1 // pred_fallthru
      _
    // Predicated region
    $region26: #{tpu_custom_call.1} parent=1 // pred_check
      _
    $region27: #{tpu_custom_call.1} parent=1 // pred_check_branch
      %90 = sbr.rel (0) target = $region29
    $region28: #{tpu_custom_call.1} parent=1 // pred_region
      %s92 = ssub.s32 128, 128
      %93 = vsyncadd [#allocation5], %s92
      %s95 = sshll.u32 [#allocation8], 4
      %s96 = int_to_ptr.vmem [resolvable:$true] %s95
      %98 = dma.vmem_to_hbm [thread:$0]  %s96, 128, %s2, [#allocation5]
    $region29: #{tpu_custom_call.1} parent=1 // pred_fallthru
      _
    // Predicated region
    $region30: #{tpu_custom_call.1} parent=1 // pred_check
      _
    $region31: #{tpu_custom_call.1} parent=1 // pred_check_branch
      %100 = sbr.rel (0) target = $region33
    $region32: #{tpu_custom_call.1} parent=1 // pred_region
      %101 = dma.done [#allocation5], 128
    $region33: #{tpu_custom_call.1} parent=1 // pred_fallthru
      _
    %102 = vsyncpa [#allocation4], 1
    %103 = vsyncpa [#allocation7], 1
    %104 = vsyncpa [#allocation5], 1

</llo_original>
